<compile_context>
chip_gen: v7x
topology: tpu7x:2x2x1
jax: 0.10.0
libtpu: 0.0.40
codegen_flags: <defaults>
</compile_context>

<pallas_src>
import functools
import math

import jax
import jax.numpy as jnp
import numpy as np
from jax import lax
from jax.experimental import pallas as pl
from jax.experimental.pallas import tpu as pltpu

_MIB = 1024 * 1024


def _round_up(x, m):
    return (x + m - 1) // m * m


def _vmem_limit(estimate_bytes):
    # Computed per-kernel footprint + headroom, floored at the 32 MiB scoped default
    # (always safe) and capped below v5e/v6e physical VMEM; never a blanket full-VMEM ask.
    return int(max(32 * _MIB, min(int(estimate_bytes), 100 * _MIB)))


# --------------------------------------------------------------------------------------
# Kernel A1: fused row-tiled [Q|K|V] projection (bf16 operands, f32 accumulation).
# Emits the Q table and the packed [K|V] table as two outputs directly.
# --------------------------------------------------------------------------------------
def _qkv_proj_kernel(x_ref, w_ref, b_ref, q_ref, kv_ref, *, hdp):
    acc = (jnp.dot(x_ref[...], w_ref[...], preferred_element_type=jnp.float32)
           + b_ref[...])
    q_ref[...] = acc[:, :hdp].astype(q_ref.dtype)
    kv_ref[...] = acc[:, hdp:].astype(kv_ref.dtype)


def _qkv_projection(x, w, b, row_tile, hdp):
    rows, k = x.shape
    width = w.shape[1]                                  # == 3 * hdp
    est = ((row_tile * k * x.dtype.itemsize + k * width * w.dtype.itemsize
            + width * 4 + 2 * row_tile * width * 4) * 2 * 1.25)
    return pl.pallas_call(
        functools.partial(_qkv_proj_kernel, hdp=hdp),
        grid=(rows // row_tile,),
        in_specs=[pl.BlockSpec((row_tile, k), lambda i: (i, 0)),
                  pl.BlockSpec((k, width), lambda i: (0, 0)),
                  pl.BlockSpec((1, width), lambda i: (0, 0))],
        out_specs=[pl.BlockSpec((row_tile, hdp), lambda i: (i, 0)),
                   pl.BlockSpec((row_tile, 2 * hdp), lambda i: (i, 0))],
        out_shape=(jax.ShapeDtypeStruct((rows, hdp), jnp.float32),
                   jax.ShapeDtypeStruct((rows, 2 * hdp), jnp.float32)),
        compiler_params=pltpu.CompilerParams(
            dimension_semantics=("parallel",),
            vmem_limit_bytes=_vmem_limit(est)),
    )(x, w, b)
    # TODO(synk): emit the node tables in bf16 (halves the resident VMEM on v7x) once
    # dynamic single-row gathers from sublane-packed bf16 refs are robust.


# --------------------------------------------------------------------------------------
# Kernel A2: plain row-tiled linear (edge-feature projection E).
# --------------------------------------------------------------------------------------
def _linear_kernel(x_ref, w_ref, b_ref, o_ref):
    o_ref[...] = (jnp.dot(x_ref[...], w_ref[...],
                          preferred_element_type=jnp.float32)
                  + b_ref[...]).astype(o_ref.dtype)


def _linear(x, w, b, row_tile):
    rows, k = x.shape
    width = w.shape[1]
    est = ((row_tile * k * x.dtype.itemsize + k * width * w.dtype.itemsize
            + width * 4 + row_tile * width * 4) * 2 * 1.25)
    return pl.pallas_call(
        _linear_kernel,
        grid=(rows // row_tile,),
        in_specs=[pl.BlockSpec((row_tile, k), lambda i: (i, 0)),
                  pl.BlockSpec((k, width), lambda i: (0, 0)),
                  pl.BlockSpec((1, width), lambda i: (0, 0))],
        out_specs=pl.BlockSpec((row_tile, width), lambda i: (i, 0)),
        out_shape=jax.ShapeDtypeStruct((rows, width), jnp.float32),
        compiler_params=pltpu.CompilerParams(
            dimension_semantics=("parallel",),
            vmem_limit_bytes=_vmem_limit(est)),
    )(x, w, b)


# --------------------------------------------------------------------------------------
# Kernel B: edge-tiled SAN attention message passing.
#   grid = (splits ['parallel'], edge tiles per split ['arbitrary' reduction]).
#   Per-split [wV | z] accumulator is the revisited output block; src/dst ids arrive as
#   per-tile SMEM blocks; edges are pre-sorted by dst so the scatter merges same-dst runs.
# --------------------------------------------------------------------------------------
def _edge_attention_kernel(src_ref, dst_ref,                       # per-tile edge ids (SMEM)
                           q_ref, kv_ref, e_ref, hs_ref, hst_ref,  # inputs (VMEM)
                           acc_ref, score_ref,                     # outputs (VMEM)
                           kv_scr, q_scr, msg_scr,                 # scratch (VMEM)
                           *, tile, hdp, inv_sqrt_d):
    t = pl.program_id(1)

    @pl.when(t == 0)
    def _init():
        acc_ref[...] = jnp.zeros_like(acc_ref)

    # ---- gather K|V of src node and Q of dst node for this edge tile (unrolled) ----
    def _gather(i, carry):
        s = src_ref[i]
        d = dst_ref[i]
        kv_scr[pl.ds(i, 1), :] = kv_ref[pl.ds(s, 1), :]
        q_scr[pl.ds(i, 1), :] = q_ref[pl.ds(d, 1), :]
        return carry
    lax.fori_loop(0, tile, _gather, 0, unroll=8)
    # TODO(synk): on v5e, stage gathered rows in groups of 8 before storing (single
    # vector-store slot there makes 1-row masked stores the binding cost).

    k_src = kv_scr[:, :hdp]
    v_src = kv_scr[:, hdp:]
    q_dst = q_scr[...]

    # score = (K_src * Q_dst) / sqrt(D) * E          (== g.edata['score'])
    score = (k_src * q_dst) * inv_sqrt_d * e_ref[...]
    score_ref[...] = score                            # lane-dense (tile, hdp) store

    # score_soft = exp(clamp(per-head sum, -5, 5)); broadcast back over each head's lanes.
    s_head = jnp.dot(score, hs_ref[...], preferred_element_type=jnp.float32)   # (tile, H)
    soft = jnp.exp(jnp.clip(s_head, -5.0, 5.0))
    soft_b = jnp.dot(soft, hst_ref[...], preferred_element_type=jnp.float32)   # (tile, hdp)

    # stage per-edge [V_src*soft | soft] messages
    msg_scr[:, :hdp] = v_src * soft_b
    msg_scr[:, hdp:] = soft_b

    # ---- run-merged scatter-add: edges are pre-sorted by dst, so consecutive messages
    # for the same destination accumulate in vregs and flush with one RMW per run. ----
    def _scatter(i, carry):
        run_dst, run_acc = carry
        d = dst_ref[i]
        msg = msg_scr[pl.ds(i, 1), :]
        new_run = d != run_dst

        @pl.when(new_run)
        def _flush():
            acc_ref[pl.ds(run_dst, 1), :] = acc_ref[pl.ds(run_dst, 1), :] + run_acc

        next_acc = jnp.where(new_run, msg, run_acc + msg)
        return d, next_acc

    init = (dst_ref[0], jnp.zeros((1, 2 * hdp), jnp.float32))
    last_dst, last_acc = lax.fori_loop(0, tile, _scatter, init, unroll=8)
    acc_ref[pl.ds(last_dst, 1), :] = acc_ref[pl.ds(last_dst, 1), :] + last_acc
    # TODO(synk): when HDp > 128, shrink the z half of the accumulator to 128 lanes
    # (only H values are distinct) to cut resident VMEM further on v7x.


# --------------------------------------------------------------------------------------
# Kernel C: node-tiled finalize -- sum the per-split partial accumulators and divide.
# --------------------------------------------------------------------------------------
def _finalize_kernel(acc_ref, o_ref, *, hdp):
    acc = jnp.sum(acc_ref[...], axis=0)               # (Tn, 2*hdp): sum split partials
    o_ref[...] = acc[:, :hdp] / (acc[:, hdp:] + 1e-6)


# --------------------------------------------------------------------------------------
# Wrapper: MultiHeadAttentionLayer.forward (attention_for='h', full_graph=False, bias=True)
#   h: (N, in_dim), e: (E, in_dim), src_ids/dst_ids: (E,) int,
#   params = (wq, bq, wk, bk, we, be, wv, bv) with weights as (in_dim, H*D) (torch W^T).
# Returns h_out: (N, H, D), score: (E, H, D)
# --------------------------------------------------------------------------------------
def multi_head_attention(h, e, src_ids, dst_ids, params, *, num_heads, out_dim,
                         edge_tile=512, node_tile=512, edge_splits=2,
                         compute_dtype=jnp.bfloat16):
    assert node_tile % 16 == 0 and edge_tile % 16 == 0 and edge_splits >= 1
    N, in_dim = h.shape
    E = int(e.shape[0])
    H, D = num_heads, out_dim
    S = edge_splits

    # pad each head's feature dim so the packed lane width H*Dp is a multiple of 128
    step = 128 // math.gcd(H, 128)
    Dp = _round_up(D, step)
    HDp = H * Dp

    wq, bq, wk, bk, we, be, wv, bv = params

    def pad_w(w):                     # (in_dim, H*D) -> (in_dim, H*Dp), zero pad lanes
        w3 = w.reshape(in_dim, H, D)
        return jnp.pad(w3, ((0, 0), (0, 0), (0, Dp - D))).reshape(in_dim, HDp)

    def pad_b(b):                     # (H*D,) -> (1, H*Dp)
        b2 = b.reshape(H, D)
        return jnp.pad(b2, ((0, 0), (0, Dp - D))).reshape(1, HDp)

    # fused [Q | K | V] projection (one matmul instead of three)
    w_qkv = jnp.concatenate([pad_w(wq), pad_w(wk), pad_w(wv)], axis=1)   # (in_dim, 3*HDp)
    b_qkv = jnp.concatenate([pad_b(bq), pad_b(bk), pad_b(bv)], axis=1)   # (1, 3*HDp)
    w_e, b_e = pad_w(we), pad_b(be)

    # ---- row padding (>= N+1 node rows so padded edges can target a dummy node) ----
    N_pad = _round_up(N + 1, 16)
    Tn = min(node_tile, N_pad)
    N_pad = _round_up(N_pad, Tn)
    E_pad = _round_up(max(E, 1), 16)
    Te = min(edge_tile, E_pad)
    E_pad = _round_up(E_pad, S * Te)
    tiles_per_split = E_pad // (S * Te)

    h_pad = jnp.zeros((N_pad, in_dim), compute_dtype).at[:N].set(h.astype(compute_dtype))
    e_pad = jnp.zeros((E_pad, in_dim), compute_dtype).at[:E].set(e.astype(compute_dtype))

    # padded edges: src -> any valid row (0), dst -> dummy node row N (sliced off later)
    src_pad = jnp.zeros((E_pad,), jnp.int32).at[:E].set(src_ids.astype(jnp.int32))
    dst_pad = jnp.full((E_pad,), N, jnp.int32).at[:E].set(dst_ids.astype(jnp.int32))

    # sort edges by destination so the in-kernel scatter can merge same-dst runs
    perm = jnp.argsort(dst_pad)
    inv_perm = jnp.zeros((E_pad,), jnp.int32).at[perm].set(
        jnp.arange(E_pad, dtype=jnp.int32))
    src_srt = jnp.take(src_pad, perm)
    dst_srt = jnp.take(dst_pad, perm)
    e_srt = jnp.take(e_pad, perm, axis=0)

    # projections (bf16 matmul operands, f32 accumulation / outputs)
    q_tab, kv_tab = _qkv_projection(h_pad, w_qkv.astype(compute_dtype), b_qkv, Tn, HDp)
    e_proj = _linear(e_srt, w_e.astype(compute_dtype), b_e, Te)          # (E_pad, HDp)

    # constant block matrices: per-head lane sum (HDp, H) and per-head broadcast (H, HDp)
    hsum = jnp.asarray(np.kron(np.eye(H, dtype=np.float32),
                               np.ones((Dp, 1), dtype=np.float32)))
    hsum_t = hsum.T

    est = (((N_pad * 3 * HDp * 4               # resident Q + [K|V] node tables
             + 2 * HDp * H * 4                 # hsum / hsum_t
             + N_pad * 2 * HDp * 4             # per-split [wV | z] accumulator block
             + 2 * Te * HDp * 4) * 2           # double buffering of the above + E/score tiles
            + Te * 5 * HDp * 4)                # gather / message scratch
           * 1.25)

    kernel = functools.partial(_edge_attention_kernel, tile=Te, hdp=HDp,
                               inv_sqrt_d=float(1.0 / np.sqrt(D)))

    edge_idx = lambda s, t: (s * tiles_per_split + t,)
    edge_blk = lambda s, t: (s * tiles_per_split + t, 0)
    const_blk = lambda s, t: (0, 0)

    acc_p, score_p = pl.pallas_call(
        kernel,
        grid=(S, tiles_per_split),
        in_specs=[
            pl.BlockSpec((Te,), edge_idx, memory_space=pltpu.MemorySpace.SMEM),  # src ids
            pl.BlockSpec((Te,), edge_idx, memory_space=pltpu.MemorySpace.SMEM),  # dst ids
            pl.BlockSpec((N_pad, HDp), const_blk),            # Q table   (resident)
            pl.BlockSpec((N_pad, 2 * HDp), const_blk),        # K|V table (resident)
            pl.BlockSpec((Te, HDp), edge_blk),                # E tile    (pipelined)
            pl.BlockSpec((HDp, H), const_blk),
            pl.BlockSpec((H, HDp), const_blk),
        ],
        out_specs=[
            pl.BlockSpec((None, N_pad, 2 * HDp), lambda s, t: (s, 0, 0)),  # per-split acc
            pl.BlockSpec((Te, HDp), edge_blk),                             # score tile
        ],
        scratch_shapes=[
            pltpu.VMEM((Te, 2 * HDp), jnp.float32),     # gathered [K_src | V_src]
            pltpu.VMEM((Te, HDp), jnp.float32),         # gathered Q_dst
            pltpu.VMEM((Te, 2 * HDp), jnp.float32),     # staged [V*soft | soft]
        ],
        out_shape=(jax.ShapeDtypeStruct((S, N_pad, 2 * HDp), jnp.float32),
                   jax.ShapeDtypeStruct((E_pad, HDp), jnp.float32)),
        compiler_params=pltpu.CompilerParams(
            dimension_semantics=("parallel", "arbitrary"),
            vmem_limit_bytes=_vmem_limit(est)),
    )(src_srt, dst_srt, q_tab, kv_tab, e_proj, hsum, hsum_t)

    # finalize: sum the per-split partials and divide wV by (z + 1e-6), node-tiled
    fin_est = (S * Tn * 2 * HDp * 4 + Tn * HDp * 4) * 2 * 1.25
    h_out_p = pl.pallas_call(
        functools.partial(_finalize_kernel, hdp=HDp),
        grid=(N_pad // Tn,),
        in_specs=[pl.BlockSpec((S, Tn, 2 * HDp), lambda i: (0, i, 0))],
        out_specs=pl.BlockSpec((Tn, HDp), lambda i: (i, 0)),
        out_shape=jax.ShapeDtypeStruct((N_pad, HDp), jnp.float32),
        compiler_params=pltpu.CompilerParams(
            dimension_semantics=("parallel",),
            vmem_limit_bytes=_vmem_limit(fin_est)),
    )(acc_p)

    h_out = h_out_p[:N].reshape(N, H, Dp)[:, :, :D]
    score = jnp.take(score_p, inv_perm[:E], axis=0).reshape(E, H, Dp)[:, :, :D]
    return h_out, score


# --------------------------------------------------------------------------------------
# Pure-JAX reference implementing the DGL message-passing semantics (same dtype policy).
# --------------------------------------------------------------------------------------
def reference_jax(h, e, src_ids, dst_ids, params, *, num_heads, out_dim,
                  compute_dtype=jnp.bfloat16):
    wq, bq, wk, bk, we, be, wv, bv = params
    H, D = num_heads, out_dim
    N = h.shape[0]

    def lin(x, w, b):
        return jnp.dot(x.astype(compute_dtype), w.astype(compute_dtype),
                       preferred_element_type=jnp.float32) + b.astype(jnp.float32)

    Q = lin(h, wq, bq).reshape(N, H, D)
    K = lin(h, wk, bk).reshape(N, H, D)
    V = lin(h, wv, bv).reshape(N, H, D)
    Ee = lin(e, we, be).reshape(-1, H, D)

    score = K[src_ids] * Q[dst_ids] * (1.0 / np.sqrt(D)) * Ee             # (E, H, D)
    soft = jnp.exp(jnp.clip(jnp.sum(score, axis=-1, keepdims=True), -5.0, 5.0))
    wV = jax.ops.segment_sum(V[src_ids] * soft, dst_ids, num_segments=N)
    z = jax.ops.segment_sum(soft, dst_ids, num_segments=N)
    h_out = wV / (z + 1e-6)
    return h_out, score


if __name__ == "__main__":
    # Small SAN-style config: in_dim=32, num_heads=4, out_dim(per head)=8.
    N, in_dim, num_heads, out_dim = 24, 32, 4, 8
    HD = num_heads * out_dim

    key = jax.random.PRNGKey(0)
    keys = jax.random.split(key, 12)
    h = jax.random.normal(keys[0], (N, in_dim), dtype=jnp.float32)

    # Bidirectional ring + a few random extra edges (exercises duplicates / self-loops).
    ring = np.arange(N)
    extra_src = np.asarray(jax.random.randint(keys[10], (8,), 0, N))
    extra_dst = np.asarray(jax.random.randint(keys[11], (8,), 0, N))
    src_np = np.concatenate([ring, (ring + 1) % N, extra_src]).astype(np.int32)
    dst_np = np.concatenate([(ring + 1) % N, ring, extra_dst]).astype(np.int32)
    E = src_np.shape[0]
    e = jax.random.normal(keys[1], (E, in_dim), dtype=jnp.float32)

    def lin_init(kw, kb):
        bound = 1.0 / np.sqrt(in_dim)
        w = jax.random.uniform(kw, (in_dim, HD), jnp.float32, -bound, bound)
        b = jax.random.uniform(kb, (HD,), jnp.float32, -bound, bound)
        return w, b

    wq, bq = lin_init(keys[2], keys[3])
    wk, bk = lin_init(keys[4], keys[5])
    we, be = lin_init(keys[6], keys[7])
    wv, bv = lin_init(keys[8], keys[9])
    params = (wq, bq, wk, bk, we, be, wv, bv)

    src_ids = jnp.asarray(src_np)
    dst_ids = jnp.asarray(dst_np)

    # Small tiles here only to exercise the multi-tile / multi-split / edge-padding code
    # paths at toy sizes; real-graph defaults are edge_tile=512 / node_tile=512.
    h_out, score = multi_head_attention(
        h, e, src_ids, dst_ids, params,
        num_heads=num_heads, out_dim=out_dim, edge_tile=16, node_tile=16, edge_splits=2)
    jax.block_until_ready((h_out, score))

    h_ref, score_ref = reference_jax(
        h, e, src_ids, dst_ids, params, num_heads=num_heads, out_dim=out_dim)
    np.testing.assert_allclose(np.asarray(h_out), np.asarray(h_ref), rtol=1e-3, atol=1e-3)
    np.testing.assert_allclose(np.asarray(score), np.asarray(score_ref), rtol=1e-3, atol=1e-3)

    print("KERNEL_OK")
</pallas_src>

<mosaic_0001>
module attributes {stable_mosaic.version = 11 : i64} {
  func.func @_qkv_proj_kernel(%arg0: i32, %arg1: memref<16x32xbf16, #tpu.memory_space<vmem>>, %arg2: memref<32x384xbf16, #tpu.memory_space<vmem>>, %arg3: memref<1x384xf32, #tpu.memory_space<vmem>>, %arg4: memref<16x128xf32, #tpu.memory_space<vmem>>, %arg5: memref<16x256xf32, #tpu.memory_space<vmem>>) attributes {dimension_semantics = [#tpu.dimension_semantics<parallel>], iteration_bounds = array<i64: 2>, scalar_prefetch = 0 : i64, scratch_operands = 0 : i64, tpu.core_type = #tpu.core_type<tc>, window_params = [{transform_indices = @transform_0, window_bounds = array<i64: 16, 32>}, {pipeline_mode = #tpu.pipeline_mode<synchronous>, transform_indices = @transform_1, window_bounds = array<i64: 32, 384>}, {pipeline_mode = #tpu.pipeline_mode<synchronous>, transform_indices = @transform_2, window_bounds = array<i64: 1, 384>}, {transform_indices = @transform_3, window_bounds = array<i64: 16, 128>}, {transform_indices = @transform_4, window_bounds = array<i64: 16, 256>}]} {
    %c0 = arith.constant 0 : index
    %c0_0 = arith.constant 0 : index
    %0 = vector.load %arg1[%c0, %c0_0] : memref<16x32xbf16, #tpu.memory_space<vmem>>, vector<16x32xbf16>
    %c0_1 = arith.constant 0 : index
    %c0_2 = arith.constant 0 : index
    %1 = vector.load %arg2[%c0_1, %c0_2] : memref<32x384xbf16, #tpu.memory_space<vmem>>, vector<32x384xbf16>
    %cst = arith.constant dense<0.000000e+00> : vector<16x384xf32>
    %2 = tpu.matmul %0, %1, %cst {dimension_numbers = #tpu.dot_dimension_numbers<[1], [0], [0], [1], [0, 0, 1, 1], [], []>} : vector<16x32xbf16>, vector<32x384xbf16>, vector<16x384xf32> -> vector<16x384xf32>
    %c0_3 = arith.constant 0 : index
    %c0_4 = arith.constant 0 : index
    %3 = vector.load %arg3[%c0_3, %c0_4] : memref<1x384xf32, #tpu.memory_space<vmem>>, vector<1x384xf32>
    %4 = vector.broadcast %3 : vector<1x384xf32> to vector<16x384xf32>
    %5 = arith.addf %2, %4 : vector<16x384xf32>
    %6 = vector.extract_strided_slice %5 {offsets = [0, 0], sizes = [16, 128], strides = [1, 1]} : vector<16x384xf32> to vector<16x128xf32>
    %c0_5 = arith.constant 0 : index
    %c0_6 = arith.constant 0 : index
    %7 = vector.load %arg4[%c0_5, %c0_6] : memref<16x128xf32, #tpu.memory_space<vmem>>, vector<16x128xf32>
    tpu.vector_store %arg4[%c0_5, %c0_6], %6 {strides = array<i32>} : memref<16x128xf32, #tpu.memory_space<vmem>>, vector<16x128xf32>,
    %8 = vector.extract_strided_slice %5 {offsets = [0, 128], sizes = [16, 256], strides = [1, 1]} : vector<16x384xf32> to vector<16x256xf32>
    %c0_7 = arith.constant 0 : index
    %c0_8 = arith.constant 0 : index
    %9 = vector.load %arg5[%c0_7, %c0_8] : memref<16x256xf32, #tpu.memory_space<vmem>>, vector<16x256xf32>
    tpu.vector_store %arg5[%c0_7, %c0_8], %8 {strides = array<i32>} : memref<16x256xf32, #tpu.memory_space<vmem>>, vector<16x256xf32>,
    return
  }
  func.func @transform_0(%arg0: i32) -> (i32, i32) {
    %c0_i32 = arith.constant 0 : i32
    %c0_i32_0 = arith.constant 0 : i32
    return %arg0, %c0_i32 : i32, i32
  }
  func.func @transform_1(%arg0: i32) -> (i32, i32) {
    %c0_i32 = arith.constant 0 : i32
    %c0_i32_0 = arith.constant 0 : i32
    %c0_i32_1 = arith.constant 0 : i32
    return %c0_i32, %c0_i32_0 : i32, i32
  }
  func.func @transform_2(%arg0: i32) -> (i32, i32) {
    %c0_i32 = arith.constant 0 : i32
    %c0_i32_0 = arith.constant 0 : i32
    %c0_i32_1 = arith.constant 0 : i32
    return %c0_i32, %c0_i32_0 : i32, i32
  }
  func.func @transform_3(%arg0: i32) -> (i32, i32) {
    %c0_i32 = arith.constant 0 : i32
    %c0_i32_0 = arith.constant 0 : i32
    return %arg0, %c0_i32 : i32, i32
  }
  func.func @transform_4(%arg0: i32) -> (i32, i32) {
    %c0_i32 = arith.constant 0 : i32
    %c0_i32_0 = arith.constant 0 : i32
    return %arg0, %c0_i32 : i32, i32
  }
}

</mosaic_0001>

<llo_original>
// kernel: tpu_custom_call.1
$region0: #{tpu_custom_call.1}
  #allocation0 [shape = 'u32[]', space=smem, size = 0x4, offset = 0x4, fixed_abs, tag = 'smem constant byte address 0x4 - core index']
  #allocation1 [shape = 'u32[144,128]{1,0:T(1,128)}', space=vmem, size = 0x12000, scoped, tag = 'internal scratch']
  %s0 = inlined_call_operand.hbm [shape: bf16[32,32], index: 0, kind: input, shape index: {}]
  %s1 = inlined_call_operand.hbm [shape: bf16[32,384], index: 1, kind: input, shape index: {}]
  %s2 = inlined_call_operand.vmem [shape: f32[1,384], index: 2, kind: input, shape index: {}]
  %s3 = inlined_call_operand.hbm [shape: f32[32,128], index: 3, kind: output, shape index: {0}]
  %s4 = inlined_call_operand.hbm [shape: f32[32,256], index: 4, kind: output, shape index: {1}]
  %5 = xla_tuple %s3, %s4
  %s6 = sld [smem:[#allocation0]]
  $region61: #{tpu_custom_call.1} parent=0
    _
  %s8 = ssub.s32 1, %s6
  %s9 = scalar_select 0, %s8, %s6
  $region1: #{tpu_custom_call.1} parent=0
    #allocation2 [shape = 'u8[8192]{0}', space=vmem, size = 0x2000, scoped, tag = 'input window, operand 0']
    #allocation3 [shape = 's32[2]{0}', space=sflag, size = 0x8, scoped, tag = 'scoped memory for tpu_custom_call.1']
    #allocation4 [shape = 's32[2]{0}', space=sflag, size = 0x8, scoped, tag = 'scoped memory for tpu_custom_call.1']
    #allocation5 [shape = 'u8[24576]{0}', space=vmem, size = 0x6000, scoped, tag = 'input window, operand 1, single buffered']
    #allocation6 [shape = 's32[1]{0}', space=sflag, size = 0x4, scoped, tag = 'scoped memory for tpu_custom_call.1']
    #allocation7 [shape = 'u8[16384]{0}', space=vmem, size = 0x4000, scoped, tag = 'output window, operand 0']
    #allocation8 [shape = 'u8[32768]{0}', space=vmem, size = 0x8000, scoped, tag = 'output window, operand 1']
    #allocation9 [shape = 's32[2]{0}', space=sflag, size = 0x8, scoped, tag = 'scoped memory for tpu_custom_call.1']
    %10 = vsyncpa [#allocation3], 0
    %s11 = scalar_lea.sflag [#allocation3], 1
    %12 = vsyncpa %s11, 0
    %13 = vsyncpa [#allocation6], 0
    %14 = vsyncpa [#allocation4], 0
    %s15 = scalar_lea.sflag [#allocation4], 1
    %16 = vsyncpa %s15, 0
    %17 = vsyncpa [#allocation9], 0
    %s18 = scalar_lea.sflag [#allocation9], 1
    %19 = vsyncpa %s18, 0
    loop: start=0, step=1, limit=4
    $region2: #{tpu_custom_call.1} parent=1 // loop_pre_header
      _
    $region3: #{tpu_custom_call.1} parent=1 // loop_header
      %s21 = sphi 0, %s25
      %p22 = scmp.ge.s32.totalorder %s21, 4
      %s31 = sphi 0, %s33
      %s34 = sphi 0, %s31
      %s35 = sphi 0, %s34
      %s51 = sphi 0, %s35
      %s55 = sphi 0, %s55
      %s57 = sphi 0, %s55
      %s58 = sphi 0, %s57
      %s72 = sphi 0, %s58
      %s76 = sphi 0, %s76
      %s78 = sphi 0, %s76
      %s79 = sphi 0, %s78
      %s93 = sphi 0, %s79
      %s99 = sphi 0, %s101
      %s102 = sphi 0, %s99
      %s103 = sphi 0, %s102
      %s119 = sphi 0, %s103
      %s125 = sphi 0, %s127
      %s128 = sphi 0, %s125
      %s129 = sphi 0, %s128
      %s145 = sphi 0, %s129
    $region4: #{tpu_custom_call.1} parent=1 // loop_header_branch
      %24 = sbr.rel (%p22) target = $region8
    $region5: #{tpu_custom_call.1} parent=1 // loop_body
      %s26 = ssub.s32 %s21, 1
      %s27 = ssub.s32 %s21, 2
      %s28 = sadd.s32 %s21, 1
      %s29 = ssub.s32 %s21, %s28
      %p30 = scmp.eq.s32.totalorder %s29, 0
      %s32 = sadd.s32 %s31, 1
      %s33 = scalar_select %p30, %s31, %s32
      %p36 = pneg %p30
      %p37 = scmp.eq.s32.totalorder %s21, 1
      %p38 = por %p36, %p37
      %p39 = scmp.ne.s32.totalorder %s31, %s34
      %p40 = scmp.eq.s32.totalorder %s21, 0
      %p41 = por %p39, %p40
      %p42 = scmp.ne.s32.totalorder %s31, %s34
      %p43 = scmp.eq.s32.totalorder %s26, 1
      %p44 = por %p42, %p43
      %p45 = scmp.ne.s32.totalorder %s34, %s35
      %p46 = scmp.eq.s32.totalorder %s26, 0
      %p47 = por %p45, %p46
      %p48 = scmp.ne.s32.totalorder %s34, %s35
      %p49 = scmp.eq.s32.totalorder %s27, 1
      %p50 = por %p48, %p49
      %p52 = scmp.ne.s32.totalorder %s35, %s51
      %p53 = scmp.eq.s32.totalorder %s27, 0
      %p54 = por %p52, %p53
      %s56 = sadd.s32 %s55, 1
      %p59 = scmp.eq.s32.totalorder %s21, 1
      %p60 = scmp.ne.s32.totalorder %s55, %s57
      %p61 = scmp.eq.s32.totalorder %s21, 0
      %p62 = por %p60, %p61
      %p63 = scmp.ne.s32.totalorder %s55, %s57
      %p64 = scmp.eq.s32.totalorder %s26, 1
      %p65 = por %p63, %p64
      %p66 = scmp.ne.s32.totalorder %s57, %s58
      %p67 = scmp.eq.s32.totalorder %s26, 0
      %p68 = por %p66, %p67
      %p69 = scmp.ne.s32.totalorder %s57, %s58
      %p70 = scmp.eq.s32.totalorder %s27, 1
      %p71 = por %p69, %p70
      %p73 = scmp.ne.s32.totalorder %s58, %s72
      %p74 = scmp.eq.s32.totalorder %s27, 0
      %p75 = por %p73, %p74
      %s77 = sadd.s32 %s76, 1
      %p80 = scmp.eq.s32.totalorder %s21, 1
      %p81 = scmp.ne.s32.totalorder %s76, %s78
      %p82 = scmp.eq.s32.totalorder %s21, 0
      %p83 = por %p81, %p82
      %p84 = scmp.ne.s32.totalorder %s76, %s78
      %p85 = scmp.eq.s32.totalorder %s26, 1
      %p86 = por %p84, %p85
      %p87 = scmp.ne.s32.totalorder %s78, %s79
      %p88 = scmp.eq.s32.totalorder %s26, 0
      %p89 = por %p87, %p88
      %p90 = scmp.ne.s32.totalorder %s78, %s79
      %p91 = scmp.eq.s32.totalorder %s27, 1
      %p92 = por %p90, %p91
      %p94 = scmp.ne.s32.totalorder %s79, %s93
      %p95 = scmp.eq.s32.totalorder %s27, 0
      %p96 = por %p94, %p95
      %s97 = ssub.s32 %s21, %s28
      %p98 = scmp.eq.s32.totalorder %s97, 0
      %s100 = sadd.s32 %s99, 1
      %s101 = scalar_select %p98, %s99, %s100
      %p104 = pneg %p98
      %p105 = scmp.eq.s32.totalorder %s21, 1
      %p106 = por %p104, %p105
      %p107 = scmp.ne.s32.totalorder %s99, %s102
      %p108 = scmp.eq.s32.totalorder %s21, 0
      %p109 = por %p107, %p108
      %p110 = scmp.ne.s32.totalorder %s99, %s102
      %p111 = scmp.eq.s32.totalorder %s26, 1
      %p112 = por %p110, %p111
      %p113 = scmp.ne.s32.totalorder %s102, %s103
      %p114 = scmp.eq.s32.totalorder %s26, 0
      %p115 = por %p113, %p114
      %p116 = scmp.ne.s32.totalorder %s102, %s103
      %p117 = scmp.eq.s32.totalorder %s27, 1
      %p118 = por %p116, %p117
      %p120 = scmp.ne.s32.totalorder %s103, %s119
      %p121 = scmp.eq.s32.totalorder %s27, 0
      %p122 = por %p120, %p121
      %s123 = ssub.s32 %s21, %s28
      %p124 = scmp.eq.s32.totalorder %s123, 0
      %s126 = sadd.s32 %s125, 1
      %s127 = scalar_select %p124, %s125, %s126
      %p130 = pneg %p124
      %p131 = scmp.eq.s32.totalorder %s21, 1
      %p132 = por %p130, %p131
      %p133 = scmp.ne.s32.totalorder %s125, %s128
      %p134 = scmp.eq.s32.totalorder %s21, 0
      %p135 = por %p133, %p134
      %p136 = scmp.ne.s32.totalorder %s125, %s128
      %p137 = scmp.eq.s32.totalorder %s26, 1
      %p138 = por %p136, %p137
      %p139 = scmp.ne.s32.totalorder %s128, %s129
      %p140 = scmp.eq.s32.totalorder %s26, 0
      %p141 = por %p139, %p140
      %p142 = scmp.ne.s32.totalorder %s128, %s129
      %p143 = scmp.eq.s32.totalorder %s27, 1
      %p144 = por %p142, %p143
      %p146 = scmp.ne.s32.totalorder %s129, %s145
      %p147 = scmp.eq.s32.totalorder %s27, 0
      %p148 = por %p146, %p147
      %p149 = scmp.le.s32.totalorder 1, %s21
      %p150 = scmp.lt.s32.totalorder %s21, 3
      %p151 = pnand %p149, %p150
      %p152 = pneg %p151
      // Predicated region
      $region9: #{tpu_custom_call.1} parent=5 // pred_check
        _
      $region10: #{tpu_custom_call.1} parent=5 // pred_check_branch
        %154 = sbr.rel (%p151) target = $region12
      $region11: #{tpu_custom_call.1} parent=5 // pred_region
        %s155 = ssub.s32 %s21, 1
        // Predicated region
        $region13: #{tpu_custom_call.1} parent=11 // pred_check
          %p156 = pneg %p68
        $region14: #{tpu_custom_call.1} parent=11 // pred_check_branch
          %158 = sbr.rel (%p156) target = $region16
        $region15: #{tpu_custom_call.1} parent=11 // pred_region
          %s160 = ssub.s32 768, 768
          %161 = vsyncadd [#allocation6], %s160
          %s162 = sshll.u32 [#allocation5], 4
          %s163 = int_to_ptr.vmem [resolvable:$true] %s162
          %168 = dma.hbm_to_vmem [thread:$0]  %s1, 768, %s163, [#allocation6], 192, 192, 12
        $region16: #{tpu_custom_call.1} parent=11 // pred_fallthru
          _
        // Predicated region
        $region17: #{tpu_custom_call.1} parent=11 // pred_check
          %p169 = pneg %p89
        $region18: #{tpu_custom_call.1} parent=11 // pred_check_branch
          %171 = sbr.rel (%p169) target = $region20
        $region19: #{tpu_custom_call.1} parent=11 // pred_region
          _
        $region20: #{tpu_custom_call.1} parent=11 // pred_fallthru
          _
      $region12: #{tpu_custom_call.1} parent=5 // pred_fallthru
        _
      %p172 = scmp.lt.s32.totalorder %s21, 2
      // Predicated region
      $region21: #{tpu_custom_call.1} parent=5 // pred_check
        %p173 = pneg %p172
      $region22: #{tpu_custom_call.1} parent=5 // pred_check_branch
        %175 = sbr.rel (%p173) target = $region24
      $region23: #{tpu_custom_call.1} parent=5 // pred_region
        // Predicated region
        $region25: #{tpu_custom_call.1} parent=23 // pred_check
          %p176 = pneg %p41
        $region26: #{tpu_custom_call.1} parent=23 // pred_check_branch
          %178 = sbr.rel (%p176) target = $region28
        $region27: #{tpu_custom_call.1} parent=23 // pred_region
          %s179 = sand.u32 %s31, 1
          %s180 = scalar_lea.sflag [#allocation3], %s179
          %s181 = sand.u32 %s31, 1
          %s182 = smul.addr %s181, 8
          %s183 = scalar_lea.vmem [#allocation2], %s182
          %s184 = smul.u32 2, %s21
          %s186 = ssub.s32 128, 128
          %187 = vsyncadd %s180, %s186
          %s188 = smul.addr %s184, 64
          %s189 = scalar_lea.hbm %s0, %s188
          %s190 = sshll.u32 %s183, 4
          %s191 = int_to_ptr.vmem [resolvable:$true] %s190
          %196 = dma.hbm_to_vmem [thread:$0]  %s189, 128, %s191, %s180, 64, 64, 4
        $region28: #{tpu_custom_call.1} parent=23 // pred_fallthru
          _
      $region24: #{tpu_custom_call.1} parent=5 // pred_fallthru
        _
      %p197 = scmp.le.s32.totalorder 1, %s21
      %p198 = scmp.lt.s32.totalorder %s21, 3
      %p199 = pnand %p197, %p198
      %p200 = pneg %p199
      // Predicated region
      $region29: #{tpu_custom_call.1} parent=5 // pred_check
        _
      $region30: #{tpu_custom_call.1} parent=5 // pred_check_branch
        %202 = sbr.rel (%p199) target = $region32
      $region31: #{tpu_custom_call.1} parent=5 // pred_region
        %s203 = ssub.s32 %s21, 1
        %s204 = sand.u32 %s34, 1
        %s205 = scalar_lea.sflag [#allocation3], %s204
        %s206 = sand.u32 %s34, 1
        %s207 = smul.addr %s206, 8
        %s208 = scalar_lea.vmem [#allocation2], %s207
        // Predicated region
        $region33: #{tpu_custom_call.1} parent=31 // pred_check
          %p209 = pneg %p47
        $region34: #{tpu_custom_call.1} parent=31 // pred_check_branch
          %211 = sbr.rel (%p209) target = $region36
        $region35: #{tpu_custom_call.1} parent=31 // pred_region
          %212 = dma.done %s205, 128
        $region36: #{tpu_custom_call.1} parent=31 // pred_fallthru
          _
        // Predicated region
        $region37: #{tpu_custom_call.1} parent=31 // pred_check
          %p213 = pneg %p68
        $region38: #{tpu_custom_call.1} parent=31 // pred_check_branch
          %215 = sbr.rel (%p213) target = $region40
        $region39: #{tpu_custom_call.1} parent=31 // pred_region
          %216 = dma.done [#allocation6], 768
        $region40: #{tpu_custom_call.1} parent=31 // pred_fallthru
          _
        %s217 = sand.u32 %s34, 1
        %s218 = scalar_lea.sflag [#allocation3], %s217
        %s219 = sand.u32 %s34, 1
        %s220 = smul.addr %s219, 8
        %s221 = scalar_lea.vmem [#allocation2], %s220
        %p222 = pneg %p47
        %p223 = pneg %p44
        %p224 = pneg %p68
        %p225 = pneg %p65
        %p226 = pneg %p89
        %p227 = pneg %p86
        %p228 = pneg %p115
        %p229 = pneg %p112
        %s230 = sand.u32 %s102, 1
        %s231 = scalar_lea.sflag [#allocation4], %s230
        %s232 = sand.u32 %s102, 1
        %s233 = smul.addr %s232, 16
        %s234 = scalar_lea.vmem [#allocation7], %s233
        %p235 = pneg %p141
        %p236 = pneg %p138
        %s237 = sand.u32 %s128, 1
        %s238 = scalar_lea.sflag [#allocation9], %s237
        %s239 = sand.u32 %s128, 1
        %s240 = smul.addr %s239, 32
        %s241 = scalar_lea.vmem [#allocation8], %s240
        %s242 = smul.u32 2, %s26
        %s243 = smul.u32 2, %s26
        %s244 = smul.u32 2, %s26
        %v246 = vld [vmem:[%s208] sm:$0xf]
        %v247 = vld [vmem:[%s208 + $0x4] sm:$0xf]
        %v248 = vld [vmem:[#allocation5] sm:$0xff]
        %v249 = vld [vmem:[#allocation5 + $0x8] sm:$0xf]
        %v250 = vld [vmem:[#allocation5 + $0xc] sm:$0xff]
        %v251 = vld [vmem:[#allocation5 + $0x14] sm:$0xf]
        %v252 = vld [vmem:[#allocation5 + $0x18] sm:$0xff]
        %v253 = vld [vmem:[#allocation5 + $0x20] sm:$0xf]
        %v254 = vld [vmem:[#allocation5 + $0x24] sm:$0xff]
        %v255 = vld [vmem:[#allocation5 + $0x2c] sm:$0xf]
        %v256 = vld [vmem:[%s2] sm:$0x7]
        %v258 = vlaneseq
        %v259 = vshrl.u32 %v258, 7
        %v260 = vsub.s32 0, %v259
        %v261 = vrot.slane %v256, %v260
        %v262 = vlaneseq
        %v263 = vshrl.u32 %v262, 7
        %v264 = vsub.s32 1, %v263
        %v265 = vrot.slane %v256, %v264
        %v266 = vlaneseq
        %v267 = vshrl.u32 %v266, 7
        %v268 = vsub.s32 2, %v267
        %v269 = vrot.slane %v256, %v268
        %v275 = vunpack.c.l.b16 %v246
        %v276 = vunpack.c.l.b16 %v247
        %v277 = vpack.c.b16 %v276, %v275
        %v286 = vunpack.c.l.b16 %v248
        %v287 = vunpack.c.h.b16 %v248
        %v288 = vunpack.c.l.b16 %v249
        %v289 = vunpack.c.l.b16 %v250
        %v290 = vunpack.c.h.b16 %v250
        %v291 = vunpack.c.l.b16 %v251
        %v292 = vunpack.c.l.b16 %v252
        %v293 = vunpack.c.h.b16 %v252
        %v294 = vunpack.c.l.b16 %v253
        %v295 = vunpack.c.l.b16 %v254
        %v296 = vunpack.c.h.b16 %v254
        %v297 = vunpack.c.l.b16 %v255
        %v298 = vpack.c.b16 %v289, %v286
        %v299 = vpack.c.b16 %v290, %v287
        %v300 = vpack.c.b16 %v291, %v288
        %v301 = vpack.c.b16 %v295, %v292
        %v302 = vpack.c.b16 %v296, %v293
        %v303 = vpack.c.b16 %v297, %v294
        %vm310 = vcmask 261120
        %v312 = vsel %vm310, %v277, 0
        %314 = vmatprep.subr.bf16.mxu0 %v299
        %315 = vmatpush1.bf16.msra.mxu0 %v298
        %316 = vmatprep.subr.bf16.mxu0 %v302
        %317 = vmatpush1.bf16.msra.mxu0 %v301
        %318 = vmatprep.subr.bf16.mxu0 0
        %319 = vmatpush1.bf16.msra.mxu0 0
        %320 = vmatprep.subr.bf16.mxu0 0
        %321 = vmatpush1.bf16.msra.mxu0 0
        %322 = vmatprep.subr.bf16.mxu0 0
        %323 = vmatpush1.bf16.msra.mxu0 0
        %324 = vmatprep.subr.bf16.mxu0 0
        %325 = vmatpush1.bf16.msra.mxu0 0
        %326 = vmatprep.subr.bf16.mxu0 0
        %327 = vmatpush1.bf16.msra.mxu0 0
        %328 = vmatprep.subr.bf16.mxu0 0
        %329 = vmatpush1.bf16.msra.mxu0 0
        %330 = vmatprep.subr.bf16.mxu0 0
        %331 = vmatpush1.bf16.msra.mxu0 0
        %332 = vmatprep.subr.bf16.mxu0 0
        %333 = vmatpush1.bf16.msra.mxu0 0
        %334 = vmatprep.subr.bf16.mxu0 0
        %335 = vmatpush1.bf16.msra.mxu0 0
        %336 = vmatprep.subr.bf16.mxu0 0
        %337 = vmatpush1.bf16.msra.mxu0 0
        %338 = vmatprep.subr.bf16.mxu0 0
        %339 = vmatpush1.bf16.msra.mxu0 0
        %340 = vmatprep.subr.bf16.mxu0 0
        %341 = vmatpush1.bf16.msra.mxu0 0
        %342 = vmatprep.subr.bf16.mxu0 0
        %343 = vmatpush1.bf16.msra.mxu0 0
        %344 = vmatprep.subr.bf16.mxu0 0
        %345 = vmatpush1.bf16.msra.mxu0 0
        %346 = vmatprep.mubr.bf16.mxu0 0
        %347 = vmatmul.mubr.bf16.gmra.mrb[0].mxu0 %v312
        %v348 = vpop.f32.mrb[0].mxu0
        %v349 = vadd.f32 %v261, %v348
        %v350 = vpop.f32.mrb[0].mxu0
        %v351 = vadd.f32 %v265, %v350
        %v352 = vpop.f32.mrb[0].mxu0
        %v353 = vadd.f32 %v261, %v352
        %v354 = vpop.f32.mrb[0].mxu0
        %v355 = vadd.f32 %v265, %v354
        %356 = vdwg.mxu0
        %357 = vmatprep.subr.bf16.mxu0 0
        %358 = vmatpush1.bf16.msra.mxu0 %v300
        %359 = vmatprep.subr.bf16.mxu0 0
        %360 = vmatpush1.bf16.msra.mxu0 %v303
        %361 = vmatprep.subr.bf16.mxu0 0
        %362 = vmatpush1.bf16.msra.mxu0 0
        %363 = vmatprep.subr.bf16.mxu0 0
        %364 = vmatpush1.bf16.msra.mxu0 0
        %365 = vmatprep.subr.bf16.mxu0 0
        %366 = vmatpush1.bf16.msra.mxu0 0
        %367 = vmatprep.subr.bf16.mxu0 0
        %368 = vmatpush1.bf16.msra.mxu0 0
        %369 = vmatprep.subr.bf16.mxu0 0
        %370 = vmatpush1.bf16.msra.mxu0 0
        %371 = vmatprep.subr.bf16.mxu0 0
        %372 = vmatpush1.bf16.msra.mxu0 0
        %373 = vmatprep.subr.bf16.mxu0 0
        %374 = vmatpush1.bf16.msra.mxu0 0
        %375 = vmatprep.subr.bf16.mxu0 0
        %376 = vmatpush1.bf16.msra.mxu0 0
        %377 = vmatprep.subr.bf16.mxu0 0
        %378 = vmatpush1.bf16.msra.mxu0 0
        %379 = vmatprep.subr.bf16.mxu0 0
        %380 = vmatpush1.bf16.msra.mxu0 0
        %381 = vmatprep.subr.bf16.mxu0 0
        %382 = vmatpush1.bf16.msra.mxu0 0
        %383 = vmatprep.subr.bf16.mxu0 0
        %384 = vmatpush1.bf16.msra.mxu0 0
        %385 = vmatprep.subr.bf16.mxu0 0
        %386 = vmatpush1.bf16.msra.mxu0 0
        %387 = vmatprep.subr.bf16.mxu0 0
        %388 = vmatpush1.bf16.msra.mxu0 0
        %389 = vmatprep.mubr.bf16.mxu0 0
        %390 = vmatmul.mubr.bf16.gmra.mrb[0].mxu0 %v312
        %v391 = vpop.f32.mrb[0].mxu0
        %v392 = vadd.f32 %v269, %v391
        %v393 = vpop.f32.mrb[0].mxu0
        %v394 = vpop.f32.mrb[0].mxu0
        %v395 = vadd.f32 %v269, %v394
        %v396 = vpop.f32.mrb[0].mxu0
        %397 = vdwg.mxu0
        %398 = vst [vmem:[%s234] sm:$0xff] %v349
        %399 = vst [vmem:[%s234 + $0x8] sm:$0xff] %v353
        %400 = vst [vmem:[%s241] sm:$0xff] %v351
        %401 = vst [vmem:[%s241 + $0x8] sm:$0xff] %v392
        %402 = vst [vmem:[%s241 + $0x10] sm:$0xff] %v355
        %403 = vst [vmem:[%s241 + $0x18] sm:$0xff] %v395
        %s404 = sand.u32 %s102, 1
        %s405 = scalar_lea.sflag [#allocation4], %s404
        %s406 = sand.u32 %s102, 1
        %s407 = smul.addr %s406, 16
        %s408 = scalar_lea.vmem [#allocation7], %s407
        %s409 = sand.u32 %s128, 1
        %s410 = scalar_lea.sflag [#allocation9], %s409
        %s411 = sand.u32 %s128, 1
        %s412 = smul.addr %s411, 32
        %s413 = scalar_lea.vmem [#allocation8], %s412
        // Predicated region
        $region41: #{tpu_custom_call.1} parent=31 // pred_check
          %p414 = pneg %p112
        $region42: #{tpu_custom_call.1} parent=31 // pred_check_branch
          %416 = sbr.rel (%p414) target = $region44
        $region43: #{tpu_custom_call.1} parent=31 // pred_region
          %s417 = smul.u32 2, %s26
          %s419 = ssub.s32 256, 256
          %420 = vsyncadd %s405, %s419
          %s421 = smul.addr %s417, 128
          %s422 = scalar_lea.hbm %s3, %s421
          %s423 = sshll.u32 %s408, 4
          %s424 = int_to_ptr.vmem [resolvable:$true] %s423
          %429 = dma.vmem_to_hbm [thread:$0]  %s424, 256, %s422, %s405, 128, 128, 8
        $region44: #{tpu_custom_call.1} parent=31 // pred_fallthru
          _
        // Predicated region
        $region45: #{tpu_custom_call.1} parent=31 // pred_check
          %p430 = pneg %p138
        $region46: #{tpu_custom_call.1} parent=31 // pred_check_branch
          %432 = sbr.rel (%p430) target = $region48
        $region47: #{tpu_custom_call.1} parent=31 // pred_region
          %s433 = smul.u32 2, %s26
          %s435 = ssub.s32 512, 512
          %436 = vsyncadd %s410, %s435
          %s437 = smul.addr %s433, 2
          %s438 = smul.addr %s437, 128
          %s439 = scalar_lea.hbm %s4, %s438
          %s440 = sshll.u32 %s413, 4
          %s441 = int_to_ptr.vmem [resolvable:$true] %s440
          %446 = dma.vmem_to_hbm [thread:$0]  %s441, 512, %s439, %s410, 256, 256, 16
        $region48: #{tpu_custom_call.1} parent=31 // pred_fallthru
          _
      $region32: #{tpu_custom_call.1} parent=5 // pred_fallthru
        _
      %p447 = scmp.le.s32.totalorder 2, %s21
      // Predicated region
      $region49: #{tpu_custom_call.1} parent=5 // pred_check
        %p448 = pneg %p447
      $region50: #{tpu_custom_call.1} parent=5 // pred_check_branch
        %450 = sbr.rel (%p448) target = $region52
      $region51: #{tpu_custom_call.1} parent=5 // pred_region
        %s451 = ssub.s32 %s21, 2
        // Predicated region
        $region53: #{tpu_custom_call.1} parent=51 // pred_check
          %p452 = pneg %p118
        $region54: #{tpu_custom_call.1} parent=51 // pred_check_branch
          %454 = sbr.rel (%p452) target = $region56
        $region55: #{tpu_custom_call.1} parent=51 // pred_region
          %s455 = sand.u32 %s103, 1
          %s456 = scalar_lea.sflag [#allocation4], %s455
          %s457 = sand.u32 %s103, 1
          %s458 = smul.addr %s457, 16
          %s459 = scalar_lea.vmem [#allocation7], %s458
          %460 = dma.done %s456, 256
        $region56: #{tpu_custom_call.1} parent=51 // pred_fallthru
          _
        // Predicated region
        $region57: #{tpu_custom_call.1} parent=51 // pred_check
          %p461 = pneg %p144
        $region58: #{tpu_custom_call.1} parent=51 // pred_check_branch
          %463 = sbr.rel (%p461) target = $region60
        $region59: #{tpu_custom_call.1} parent=51 // pred_region
          %s464 = sand.u32 %s129, 1
          %s465 = scalar_lea.sflag [#allocation9], %s464
          %s466 = sand.u32 %s129, 1
          %s467 = smul.addr %s466, 32
          %s468 = scalar_lea.vmem [#allocation8], %s467
          %469 = dma.done %s465, 512
        $region60: #{tpu_custom_call.1} parent=51 // pred_fallthru
          _
      $region52: #{tpu_custom_call.1} parent=5 // pred_fallthru
        _
    $region6: #{tpu_custom_call.1} parent=1 // loop_footer
      %s25 = sadd.s32 1, %s21
    $region7: #{tpu_custom_call.1} parent=1 // loop_footer_branch
      %20 = sbr.rel target = $region3
    $region8: #{tpu_custom_call.1} parent=1 // loop_exit
      _
    %470 = vsyncpa [#allocation3], 1
    %s471 = scalar_lea.sflag [#allocation3], 1
    %472 = vsyncpa %s471, 1
    %473 = vsyncpa [#allocation6], 1
    %474 = vsyncpa [#allocation4], 1
    %s475 = scalar_lea.sflag [#allocation4], 1
    %476 = vsyncpa %s475, 1
    %477 = vsyncpa [#allocation9], 1
    %s478 = scalar_lea.sflag [#allocation9], 1
    %479 = vsyncpa %s478, 1

</llo_original>
